<compile_context>
chip_gen: v7x
topology: tpu7x:2x2x1
jax: 0.10.0
libtpu: 0.0.40
codegen_flags: <defaults>
</compile_context>

<pallas_src>
import jax
import jax.numpy as jnp
from jax.experimental import pallas as pl
from jax.experimental.pallas import tpu as pltpu

LANE = 128


def _a2c_fused_kernel(x_ref, w1_ref, b1_ref, w2_ref, b2_ref, log_std_ref,
                      mu_ref, std_ref, val_ref):
    out_dim = mu_ref.shape[-1]
    x = x_ref[...]
    # Fused actor+critic layer 1: [B, in](bf16) @ [in, 128](bf16) -> f32.
    h = jnp.dot(x, w1_ref[...], preferred_element_type=jnp.float32) + b1_ref[...]
    h = jnp.maximum(h, 0.0)
    # Fused block-diagonal head: [B, 128] @ [128, 128] -> lane-dense f32 slab
    # (stays in vregs; never written to HBM).
    out = jnp.dot(h.astype(w2_ref.dtype), w2_ref[...],
                  preferred_element_type=jnp.float32) + b2_ref[...]
    mu_ref[...] = out[:, :out_dim].astype(mu_ref.dtype)
    val_ref[...] = out[:, out_dim:out_dim + 1].astype(val_ref.dtype)
    # std = exp(log_std) broadcast over the batch, computed in-kernel so the
    # wrapper has zero extra XLA ops on the inference path.
    std_ref[...] = jnp.broadcast_to(jnp.exp(log_std_ref[...]),
                                    std_ref.shape).astype(std_ref.dtype)


def init_params(key, input_dim, hidden_dim, output_dim, std=0.0):
    """Matches init_weights: weights ~ N(0, 0.1), biases = 0.1, log_std = std.
    Linear weights are stored transposed: [in, out]."""
    k1, k2, k3, k4 = jax.random.split(key, 4)
    return {
        "w1a": 0.1 * jax.random.normal(k1, (input_dim, hidden_dim), jnp.float32),
        "b1a": jnp.full((1, hidden_dim), 0.1, jnp.float32),
        "w2a": 0.1 * jax.random.normal(k2, (hidden_dim, output_dim), jnp.float32),
        "b2a": jnp.full((1, output_dim), 0.1, jnp.float32),
        "w1c": 0.1 * jax.random.normal(k3, (input_dim, hidden_dim), jnp.float32),
        "b1c": jnp.full((1, hidden_dim), 0.1, jnp.float32),
        "w2c": 0.1 * jax.random.normal(k4, (hidden_dim, 1), jnp.float32),
        "b2c": jnp.full((1, 1), 0.1, jnp.float32),
        "log_std": jnp.full((1, output_dim), std, jnp.float32),
    }


def pack_params(params, weight_dtype=jnp.bfloat16):
    """One-time packing: fuse actor/critic weights, pad the fused hidden and
    head widths to full 128-lane tiles, and cast weights to bf16."""
    in_dim, hid = params["w1a"].shape
    out = params["w2a"].shape[1]
    hid2 = 2 * hid
    h_packed = pl.cdiv(hid2, LANE) * LANE        # lane-dense fused hidden width
    n_packed = pl.cdiv(out + 1, LANE) * LANE     # lane-dense head width

    w1 = jnp.zeros((in_dim, h_packed), jnp.float32)
    w1 = w1.at[:, :hid].set(params["w1a"])                 # actor block
    w1 = w1.at[:, hid:hid2].set(params["w1c"])             # critic block
    b1 = jnp.zeros((1, h_packed), jnp.float32)
    b1 = b1.at[:, :hid].set(params["b1a"])
    b1 = b1.at[:, hid:hid2].set(params["b1c"])

    w2 = jnp.zeros((h_packed, n_packed), jnp.float32)
    w2 = w2.at[:hid, :out].set(params["w2a"])              # actor head
    w2 = w2.at[hid:hid2, out:out + 1].set(params["w2c"])   # critic column
    b2 = jnp.zeros((1, n_packed), jnp.float32)
    b2 = b2.at[:, :out].set(params["b2a"])
    b2 = b2.at[:, out:out + 1].set(params["b2c"])

    return {
        "w1": w1.astype(weight_dtype), "b1": b1,   # biases stay f32 (post-accum add)
        "w2": w2.astype(weight_dtype), "b2": b2,
        "log_std": params["log_std"],
        "output_dim": out,
    }


def a2c_forward(x, packed, *, block_rows=4096):
    """Returns (mu, std, value) — the Normal(mu, std) parameters and critic value."""
    B, in_dim = x.shape
    out_dim = packed["output_dim"]
    w1, b1, w2, b2 = packed["w1"], packed["b1"], packed["w2"], packed["b2"]
    log_std = packed["log_std"]
    x = x.astype(w1.dtype)   # bf16 activations (halves input HBM traffic)

    out_shapes = (
        jax.ShapeDtypeStruct((B, out_dim), jnp.float32),   # mu
        jax.ShapeDtypeStruct((B, out_dim), jnp.float32),   # std
        jax.ShapeDtypeStruct((B, 1), jnp.float32),         # value
    )

    if B > block_rows:
        # Large batch: cdiv-tiled batch axis (partial last block handled by
        # Pallas) so VMEM stays bounded for any B; weights stay resident via
        # constant index_maps.
        # NOTE: on v7x, pltpu.CORE_PARALLEL on this axis shards it across the
        # two TensorCores; "parallel" kept here for v5e/v6e portability.
        grid = (pl.cdiv(B, block_rows),)
        mu, std, value = pl.pallas_call(
            _a2c_fused_kernel,
            out_shape=out_shapes,
            grid=grid,
            in_specs=[
                pl.BlockSpec((block_rows, in_dim), lambda i: (i, 0)),
                pl.BlockSpec(w1.shape, lambda i: (0, 0)),
                pl.BlockSpec(b1.shape, lambda i: (0, 0)),
                pl.BlockSpec(w2.shape, lambda i: (0, 0)),
                pl.BlockSpec(b2.shape, lambda i: (0, 0)),
                pl.BlockSpec(log_std.shape, lambda i: (0, 0)),
            ],
            out_specs=(
                pl.BlockSpec((block_rows, out_dim), lambda i: (i, 0)),
                pl.BlockSpec((block_rows, out_dim), lambda i: (i, 0)),
                pl.BlockSpec((block_rows, 1), lambda i: (i, 0)),
            ),
            compiler_params=pltpu.CompilerParams(
                dimension_semantics=("parallel",)),
        )(x, w1, b1, w2, b2, log_std)
    else:
        # Small batch (inference path): grid-less, everything resident in VMEM,
        # single dispatch, no follow-up XLA ops.
        vmem = pl.BlockSpec(memory_space=pltpu.MemorySpace.VMEM)
        mu, std, value = pl.pallas_call(
            _a2c_fused_kernel,
            out_shape=out_shapes,
            in_specs=[vmem] * 6,
            out_specs=(vmem, vmem, vmem),
        )(x, w1, b1, w2, b2, log_std)

    return mu, std, value


def _reference(x, params):
    h_a = jnp.maximum(x @ params["w1a"] + params["b1a"], 0.0)
    mu = h_a @ params["w2a"] + params["b2a"]
    h_c = jnp.maximum(x @ params["w1c"] + params["b1c"], 0.0)
    val = h_c @ params["w2c"] + params["b2c"]
    std = jnp.broadcast_to(jnp.exp(params["log_std"]), mu.shape)
    return mu, std, val


if __name__ == "__main__":
    key = jax.random.PRNGKey(0)
    batch, input_dim, hidden_dim, output_dim = 8, 16, 32, 4

    kx, kp, kx2, kx3 = jax.random.split(key, 4)
    x = jax.random.normal(kx, (batch, input_dim), jnp.float32)
    params = init_params(kp, input_dim, hidden_dim, output_dim, std=0.0)
    packed = pack_params(params)

    # --- small-batch (grid-less) path ---
    mu, std, value = a2c_forward(x, packed)
    jax.block_until_ready((mu, std, value))

    mu_r, std_r, val_r = _reference(x, params)
    assert mu.shape == (batch, output_dim)
    assert std.shape == (batch, output_dim)
    assert value.shape == (batch, 1)
    # bf16 weights/activations -> loosened tolerance for mu/value; std is exact f32.
    assert jnp.allclose(mu, mu_r, atol=3e-2), "mu mismatch"
    assert jnp.allclose(std, std_r, atol=1e-6), "std mismatch"
    assert jnp.allclose(value, val_r, atol=3e-2), "value mismatch"

    # --- batch-tiled (parallel grid) path, divisible batch ---
    big_batch = 1024
    x_big = jax.random.normal(kx2, (big_batch, input_dim), jnp.float32)
    mu_b, std_b, val_b = a2c_forward(x_big, packed, block_rows=256)
    jax.block_until_ready((mu_b, std_b, val_b))
    mu_br, std_br, val_br = _reference(x_big, params)
    assert jnp.allclose(mu_b, mu_br, atol=3e-2), "mu mismatch (tiled)"
    assert jnp.allclose(std_b, std_br, atol=1e-6), "std mismatch (tiled)"
    assert jnp.allclose(val_b, val_br, atol=3e-2), "value mismatch (tiled)"

    # --- batch-tiled path, non-divisible batch (cdiv grid, partial last block) ---
    odd_batch = 1000
    x_odd = jax.random.normal(kx3, (odd_batch, input_dim), jnp.float32)
    mu_o, std_o, val_o = a2c_forward(x_odd, packed, block_rows=256)
    jax.block_until_ready((mu_o, std_o, val_o))
    mu_or, std_or, val_or = _reference(x_odd, params)
    assert mu_o.shape == (odd_batch, output_dim) and val_o.shape == (odd_batch, 1)
    assert jnp.allclose(mu_o, mu_or, atol=3e-2), "mu mismatch (cdiv)"
    assert jnp.allclose(std_o, std_or, atol=1e-6), "std mismatch (cdiv)"
    assert jnp.allclose(val_o, val_or, atol=3e-2), "value mismatch (cdiv)"

    print("KERNEL_OK")
</pallas_src>

<mosaic_0001>
module attributes {stable_mosaic.version = 11 : i64} {
  func.func @_a2c_fused_kernel(%arg0: memref<8x16xbf16, #tpu.memory_space<vmem>>, %arg1: memref<16x128xbf16, #tpu.memory_space<vmem>>, %arg2: memref<1x128xf32, #tpu.memory_space<vmem>>, %arg3: memref<128x128xbf16, #tpu.memory_space<vmem>>, %arg4: memref<1x128xf32, #tpu.memory_space<vmem>>, %arg5: memref<1x4xf32, #tpu.memory_space<vmem>>, %arg6: memref<8x4xf32, #tpu.memory_space<vmem>>, %arg7: memref<8x4xf32, #tpu.memory_space<vmem>>, %arg8: memref<8x1xf32, #tpu.memory_space<vmem>>) attributes {dimension_semantics = [], scalar_prefetch = 0 : i64, scratch_operands = 0 : i64, tpu.core_type = #tpu.core_type<tc>} {
    %c0 = arith.constant 0 : index
    %c0_0 = arith.constant 0 : index
    %0 = vector.load %arg0[%c0, %c0_0] : memref<8x16xbf16, #tpu.memory_space<vmem>>, vector<8x16xbf16>
    %c0_1 = arith.constant 0 : index
    %c0_2 = arith.constant 0 : index
    %1 = vector.load %arg1[%c0_1, %c0_2] : memref<16x128xbf16, #tpu.memory_space<vmem>>, vector<16x128xbf16>
    %cst = arith.constant dense<0.000000e+00> : vector<8x128xf32>
    %2 = tpu.matmul %0, %1, %cst {dimension_numbers = #tpu.dot_dimension_numbers<[1], [0], [0], [1], [0, 0, 1, 1], [], []>} : vector<8x16xbf16>, vector<16x128xbf16>, vector<8x128xf32> -> vector<8x128xf32>
    %c0_3 = arith.constant 0 : index
    %c0_4 = arith.constant 0 : index
    %3 = vector.load %arg2[%c0_3, %c0_4] : memref<1x128xf32, #tpu.memory_space<vmem>>, vector<1x128xf32>
    %4 = vector.broadcast %3 : vector<1x128xf32> to vector<8x128xf32>
    %5 = arith.addf %2, %4 : vector<8x128xf32>
    %cst_5 = arith.constant 0.000000e+00 : f32
    %6 = vector.broadcast %cst_5 : f32 to vector<8x128xf32>
    %7 = arith.maximumf %5, %6 : vector<8x128xf32>
    %8 = arith.truncf %7 : vector<8x128xf32> to vector<8x128xbf16>
    %c0_6 = arith.constant 0 : index
    %c0_7 = arith.constant 0 : index
    %9 = vector.load %arg3[%c0_6, %c0_7] : memref<128x128xbf16, #tpu.memory_space<vmem>>, vector<128x128xbf16>
    %cst_8 = arith.constant dense<0.000000e+00> : vector<8x128xf32>
    %10 = tpu.matmul %8, %9, %cst_8 {dimension_numbers = #tpu.dot_dimension_numbers<[1], [0], [0], [1], [0, 0, 1, 1], [], []>} : vector<8x128xbf16>, vector<128x128xbf16>, vector<8x128xf32> -> vector<8x128xf32>
    %c0_9 = arith.constant 0 : index
    %c0_10 = arith.constant 0 : index
    %11 = vector.load %arg4[%c0_9, %c0_10] : memref<1x128xf32, #tpu.memory_space<vmem>>, vector<1x128xf32>
    %12 = vector.broadcast %11 : vector<1x128xf32> to vector<8x128xf32>
    %13 = arith.addf %10, %12 : vector<8x128xf32>
    %14 = vector.extract_strided_slice %13 {offsets = [0, 0], sizes = [8, 4], strides = [1, 1]} : vector<8x128xf32> to vector<8x4xf32>
    %c0_11 = arith.constant 0 : index
    %c0_12 = arith.constant 0 : index
    %15 = vector.load %arg6[%c0_11, %c0_12] : memref<8x4xf32, #tpu.memory_space<vmem>>, vector<8x4xf32>
    tpu.vector_store %arg6[%c0_11, %c0_12], %14 {strides = array<i32>} : memref<8x4xf32, #tpu.memory_space<vmem>>, vector<8x4xf32>,
    %16 = vector.extract_strided_slice %13 {offsets = [0, 4], sizes = [8, 1], strides = [1, 1]} : vector<8x128xf32> to vector<8x1xf32>
    %c0_13 = arith.constant 0 : index
    %c0_14 = arith.constant 0 : index
    %17 = vector.load %arg8[%c0_13, %c0_14] : memref<8x1xf32, #tpu.memory_space<vmem>>, vector<8x1xf32>
    tpu.vector_store %arg8[%c0_13, %c0_14], %16 {strides = array<i32>} : memref<8x1xf32, #tpu.memory_space<vmem>>, vector<8x1xf32>,
    %c0_15 = arith.constant 0 : index
    %c0_16 = arith.constant 0 : index
    %18 = vector.load %arg5[%c0_15, %c0_16] : memref<1x4xf32, #tpu.memory_space<vmem>>, vector<1x4xf32>
    %19 = math.exp %18 : vector<1x4xf32>
    %20 = vector.shape_cast %19 : vector<1x4xf32> to vector<1x4xf32>
    %21 = vector.broadcast %20 : vector<1x4xf32> to vector<8x4xf32>
    %c0_17 = arith.constant 0 : index
    %c0_18 = arith.constant 0 : index
    %22 = vector.load %arg7[%c0_17, %c0_18] : memref<8x4xf32, #tpu.memory_space<vmem>>, vector<8x4xf32>
    tpu.vector_store %arg7[%c0_17, %c0_18], %21 {strides = array<i32>} : memref<8x4xf32, #tpu.memory_space<vmem>>, vector<8x4xf32>,
    return
  }
}

</mosaic_0001>

<llo_original>
// kernel: tpu_custom_call.1
$region0: #{tpu_custom_call.1}
  #allocation0 [shape = 'u32[]', space=smem, size = 0x4, offset = 0x4, fixed_abs, tag = 'smem constant byte address 0x4 - core index']
  #allocation1 [shape = 'u32[144,128]{1,0:T(1,128)}', space=vmem, size = 0x12000, scoped, tag = 'internal scratch']
  %s0 = inlined_call_operand.hbm [shape: bf16[8,16], index: 0, kind: input, shape index: {}]
  %s1 = inlined_call_operand.hbm [shape: bf16[16,128], index: 1, kind: input, shape index: {}]
  %s2 = inlined_call_operand.vmem [shape: f32[1,128], index: 2, kind: input, shape index: {}]
  %s3 = inlined_call_operand.hbm [shape: bf16[128,128], index: 3, kind: input, shape index: {}]
  %s4 = inlined_call_operand.vmem [shape: f32[1,128], index: 4, kind: input, shape index: {}]
  %s5 = inlined_call_operand.vmem [shape: f32[1,4], index: 5, kind: input, shape index: {}]
  %s6 = inlined_call_operand.vmem [shape: f32[8,4], index: 6, kind: output, shape index: {0}]
  %s7 = inlined_call_operand.vmem [shape: f32[8,4], index: 7, kind: output, shape index: {1}]
  %s8 = inlined_call_operand.vmem [shape: f32[8,1], index: 8, kind: output, shape index: {2}]
  %9 = xla_tuple %s6, %s7, %s8
  %s10 = sld [smem:[#allocation0]]
  $region62: #{tpu_custom_call.1} parent=0
    _
  %s12 = ssub.s32 1, %s10
  %s13 = scalar_select 0, %s12, %s10
  $region1: #{tpu_custom_call.1} parent=0
    #allocation2 [shape = 'u8[2048]{0}', space=vmem, size = 0x800, scoped, tag = 'input window, operand 0, single buffered']
    #allocation3 [shape = 's32[1]{0}', space=sflag, size = 0x4, scoped, tag = 'scoped memory for tpu_custom_call.1']
    #allocation4 [shape = 'u8[4096]{0}', space=vmem, size = 0x1000, scoped, tag = 'input window, operand 1, single buffered']
    #allocation5 [shape = 's32[1]{0}', space=sflag, size = 0x4, scoped, tag = 'scoped memory for tpu_custom_call.1']
    #allocation6 [shape = 'u8[32768]{0}', space=vmem, size = 0x8000, scoped, tag = 'input window, operand 3, single buffered']
    %14 = vsyncpa [#allocation3], 0
    %15 = vsyncpa [#allocation5], 0
    // Predicated region
    $region2: #{tpu_custom_call.1} parent=1 // pred_check
      _
    $region3: #{tpu_custom_call.1} parent=1 // pred_check_branch
      %17 = sbr.rel (0) target = $region5
    $region4: #{tpu_custom_call.1} parent=1 // pred_region
      %s19 = ssub.s32 64, 64
      %20 = vsyncadd [#allocation3], %s19
      %s22 = sshll.u32 [#allocation2], 4
      %s23 = int_to_ptr.vmem [resolvable:$true] %s22
      %25 = dma.hbm_to_vmem [thread:$0]  %s0, 64, %s23, [#allocation3]
    $region5: #{tpu_custom_call.1} parent=1 // pred_fallthru
      _
    // Predicated region
    $region6: #{tpu_custom_call.1} parent=1 // pred_check
      _
    $region7: #{tpu_custom_call.1} parent=1 // pred_check_branch
      %27 = sbr.rel (0) target = $region9
    $region8: #{tpu_custom_call.1} parent=1 // pred_region
      %s29 = ssub.s32 128, 128
      %30 = vsyncadd [#allocation5], %s29
      %s31 = sshll.u32 [#allocation4], 4
      %s32 = int_to_ptr.vmem [resolvable:$true] %s31
      %37 = dma.hbm_to_vmem [thread:$0]  %s1, 128, %s32, [#allocation5], 64, 64, 4
    $region9: #{tpu_custom_call.1} parent=1 // pred_fallthru
      _
    // Predicated region
    $region10: #{tpu_custom_call.1} parent=1 // pred_check
      _
    $region11: #{tpu_custom_call.1} parent=1 // pred_check_branch
      %39 = sbr.rel (0) target = $region13
    $region12: #{tpu_custom_call.1} parent=1 // pred_region
      _
    $region13: #{tpu_custom_call.1} parent=1 // pred_fallthru
      _
    // Predicated region
    $region14: #{tpu_custom_call.1} parent=1 // pred_check
      _
    $region15: #{tpu_custom_call.1} parent=1 // pred_check_branch
      %41 = sbr.rel (0) target = $region17
    $region16: #{tpu_custom_call.1} parent=1 // pred_region
      %s43 = ssub.s32 1024, 1024
      %44 = vsyncadd [#allocation5], %s43
      %s45 = sshll.u32 [#allocation6], 4
      %s46 = int_to_ptr.vmem [resolvable:$true] %s45
      %51 = dma.hbm_to_vmem [thread:$0]  %s3, 1024, %s46, [#allocation5], 64, 64, 4
    $region17: #{tpu_custom_call.1} parent=1 // pred_fallthru
      _
    // Predicated region
    $region18: #{tpu_custom_call.1} parent=1 // pred_check
      _
    $region19: #{tpu_custom_call.1} parent=1 // pred_check_branch
      %53 = sbr.rel (0) target = $region21
    $region20: #{tpu_custom_call.1} parent=1 // pred_region
      _
    $region21: #{tpu_custom_call.1} parent=1 // pred_fallthru
      _
    // Predicated region
    $region22: #{tpu_custom_call.1} parent=1 // pred_check
      _
    $region23: #{tpu_custom_call.1} parent=1 // pred_check_branch
      %55 = sbr.rel (0) target = $region25
    $region24: #{tpu_custom_call.1} parent=1 // pred_region
      _
    $region25: #{tpu_custom_call.1} parent=1 // pred_fallthru
      _
    // Predicated region
    $region26: #{tpu_custom_call.1} parent=1 // pred_check
      _
    $region27: #{tpu_custom_call.1} parent=1 // pred_check_branch
      %57 = sbr.rel (0) target = $region29
    $region28: #{tpu_custom_call.1} parent=1 // pred_region
      %58 = dma.done [#allocation3], 64
    $region29: #{tpu_custom_call.1} parent=1 // pred_fallthru
      _
    // Predicated region
    $region30: #{tpu_custom_call.1} parent=1 // pred_check
      _
    $region31: #{tpu_custom_call.1} parent=1 // pred_check_branch
      %60 = sbr.rel (0) target = $region33
    $region32: #{tpu_custom_call.1} parent=1 // pred_region
      %61 = dma.done [#allocation5], 128
    $region33: #{tpu_custom_call.1} parent=1 // pred_fallthru
      _
    // Predicated region
    $region34: #{tpu_custom_call.1} parent=1 // pred_check
      _
    $region35: #{tpu_custom_call.1} parent=1 // pred_check_branch
      %63 = sbr.rel (0) target = $region37
    $region36: #{tpu_custom_call.1} parent=1 // pred_region
      %64 = dma.done [#allocation5], 1024
    $region37: #{tpu_custom_call.1} parent=1 // pred_fallthru
      _
    %v66 = vld [vmem:[#allocation2] sm:$0xf]
    %v67 = vld [vmem:[#allocation4] sm:$0xf]
    %v68 = vld [vmem:[#allocation4 + $0x4] sm:$0xf]
    %v69 = vld [vmem:[%s2] sm:$0x1]
    %v71 = vlaneseq
    %v72 = vshrl.u32 %v71, 7
    %v73 = vsub.s32 0, %v72
    %v74 = vrot.slane %v69, %v73
    %v78 = vunpack.c.l.b16 %v67
    %v79 = vunpack.c.l.b16 %v68
    %v80 = vpack.c.b16 %v79, %v78
    %vm82 = vcmask 130048
    %v84 = vsel %vm82, %v66, 0
    %86 = vmatprep.subr.bf16.mxu0 0
    %87 = vmatpush1.bf16.msra.mxu0 %v80
    %88 = vmatprep.subr.bf16.mxu0 0
    %89 = vmatpush1.bf16.msra.mxu0 0
    %90 = vmatprep.subr.bf16.mxu0 0
    %91 = vmatpush1.bf16.msra.mxu0 0
    %92 = vmatprep.subr.bf16.mxu0 0
    %93 = vmatpush1.bf16.msra.mxu0 0
    %94 = vmatprep.subr.bf16.mxu0 0
    %95 = vmatpush1.bf16.msra.mxu0 0
    %96 = vmatprep.subr.bf16.mxu0 0
    %97 = vmatpush1.bf16.msra.mxu0 0
    %98 = vmatprep.subr.bf16.mxu0 0
    %99 = vmatpush1.bf16.msra.mxu0 0
    %100 = vmatprep.subr.bf16.mxu0 0
    %101 = vmatpush1.bf16.msra.mxu0 0
    %102 = vmatprep.subr.bf16.mxu0 0
    %103 = vmatpush1.bf16.msra.mxu0 0
    %104 = vmatprep.subr.bf16.mxu0 0
    %105 = vmatpush1.bf16.msra.mxu0 0
    %106 = vmatprep.subr.bf16.mxu0 0
    %107 = vmatpush1.bf16.msra.mxu0 0
    %108 = vmatprep.subr.bf16.mxu0 0
    %109 = vmatpush1.bf16.msra.mxu0 0
    %110 = vmatprep.subr.bf16.mxu0 0
    %111 = vmatpush1.bf16.msra.mxu0 0
    %112 = vmatprep.subr.bf16.mxu0 0
    %113 = vmatpush1.bf16.msra.mxu0 0
    %114 = vmatprep.subr.bf16.mxu0 0
    %115 = vmatpush1.bf16.msra.mxu0 0
    %116 = vmatprep.subr.bf16.mxu0 0
    %117 = vmatpush1.bf16.msra.mxu0 0
    %118 = vmatprep.mubr.bf16.mxu0 0
    %119 = vmatmul.mubr.bf16.gmra.mrb[0].mxu0 %v84
    %v120 = vpop.f32.mrb[0].mxu0
    %v121 = vadd.f32 %v74, %v120
    %v122 = vpop.f32.mrb[0].mxu0
    %v123 = vpop.f32.mrb[0].mxu0
    %v124 = vpop.f32.mrb[0].mxu0
    %125 = vdwg.mxu0
    %v126 = vmax.f32 %v121, 0.0
    %v127 = vpack.c.bf16 %v126, %v126
    %v128 = vld [vmem:[#allocation6] sm:$0xf]
    %v129 = vld [vmem:[#allocation6 + $0x4] sm:$0xf]
    %v130 = vld [vmem:[#allocation6 + $0x8] sm:$0xf]
    %v131 = vld [vmem:[#allocation6 + $0xc] sm:$0xf]
    %v132 = vld [vmem:[#allocation6 + $0x10] sm:$0xf]
    %v133 = vld [vmem:[#allocation6 + $0x14] sm:$0xf]
    %v134 = vld [vmem:[#allocation6 + $0x18] sm:$0xf]
    %v135 = vld [vmem:[#allocation6 + $0x1c] sm:$0xf]
    %v136 = vld [vmem:[#allocation6 + $0x20] sm:$0xf]
    %v137 = vld [vmem:[#allocation6 + $0x24] sm:$0xf]
    %v138 = vld [vmem:[#allocation6 + $0x28] sm:$0xf]
    %v139 = vld [vmem:[#allocation6 + $0x2c] sm:$0xf]
    %v140 = vld [vmem:[#allocation6 + $0x30] sm:$0xf]
    %v141 = vld [vmem:[#allocation6 + $0x34] sm:$0xf]
    %v142 = vld [vmem:[#allocation6 + $0x38] sm:$0xf]
    %v143 = vld [vmem:[#allocation6 + $0x3c] sm:$0xf]
    %v144 = vld [vmem:[%s4] sm:$0x1]
    %v146 = vlaneseq
    %v147 = vshrl.u32 %v146, 7
    %v148 = vsub.s32 0, %v147
    %v149 = vrot.slane %v144, %v148
    %v167 = vunpack.c.l.b16 %v128
    %v168 = vunpack.c.l.b16 %v129
    %v169 = vunpack.c.l.b16 %v130
    %v170 = vunpack.c.l.b16 %v131
    %v171 = vunpack.c.l.b16 %v132
    %v172 = vunpack.c.l.b16 %v133
    %v173 = vunpack.c.l.b16 %v134
    %v174 = vunpack.c.l.b16 %v135
    %v175 = vunpack.c.l.b16 %v136
    %v176 = vunpack.c.l.b16 %v137
    %v177 = vunpack.c.l.b16 %v138
    %v178 = vunpack.c.l.b16 %v139
    %v179 = vunpack.c.l.b16 %v140
    %v180 = vunpack.c.l.b16 %v141
    %v181 = vunpack.c.l.b16 %v142
    %v182 = vunpack.c.l.b16 %v143
    %v183 = vpack.c.b16 %v168, %v167
    %v184 = vpack.c.b16 %v170, %v169
    %v185 = vpack.c.b16 %v172, %v171
    %v186 = vpack.c.b16 %v174, %v173
    %v187 = vpack.c.b16 %v176, %v175
    %v188 = vpack.c.b16 %v178, %v177
    %v189 = vpack.c.b16 %v180, %v179
    %v190 = vpack.c.b16 %v182, %v181
    %199 = vmatprep.subr.bf16.mxu0 0
    %200 = vmatpush1.bf16.msra.mxu0 %v183
    %201 = vmatprep.subr.bf16.mxu0 0
    %202 = vmatpush1.bf16.msra.mxu0 %v184
    %203 = vmatprep.subr.bf16.mxu0 0
    %204 = vmatpush1.bf16.msra.mxu0 %v185
    %205 = vmatprep.subr.bf16.mxu0 0
    %206 = vmatpush1.bf16.msra.mxu0 %v186
    %207 = vmatprep.subr.bf16.mxu0 0
    %208 = vmatpush1.bf16.msra.mxu0 %v187
    %209 = vmatprep.subr.bf16.mxu0 0
    %210 = vmatpush1.bf16.msra.mxu0 %v188
    %211 = vmatprep.subr.bf16.mxu0 0
    %212 = vmatpush1.bf16.msra.mxu0 %v189
    %213 = vmatprep.subr.bf16.mxu0 0
    %214 = vmatpush1.bf16.msra.mxu0 %v190
    %215 = vmatprep.subr.bf16.mxu0 0
    %216 = vmatpush1.bf16.msra.mxu0 0
    %217 = vmatprep.subr.bf16.mxu0 0
    %218 = vmatpush1.bf16.msra.mxu0 0
    %219 = vmatprep.subr.bf16.mxu0 0
    %220 = vmatpush1.bf16.msra.mxu0 0
    %221 = vmatprep.subr.bf16.mxu0 0
    %222 = vmatpush1.bf16.msra.mxu0 0
    %223 = vmatprep.subr.bf16.mxu0 0
    %224 = vmatpush1.bf16.msra.mxu0 0
    %225 = vmatprep.subr.bf16.mxu0 0
    %226 = vmatpush1.bf16.msra.mxu0 0
    %227 = vmatprep.subr.bf16.mxu0 0
    %228 = vmatpush1.bf16.msra.mxu0 0
    %229 = vmatprep.subr.bf16.mxu0 0
    %230 = vmatpush1.bf16.msra.mxu0 0
    %231 = vmatprep.mubr.bf16.mxu0 0
    %232 = vmatmul.mubr.bf16.gmra.mrb[0].mxu0 %v127
    %v233 = vpop.f32.mrb[0].mxu0
    %v234 = vadd.f32 %v149, %v233
    %v235 = vpop.f32.mrb[0].mxu0
    %v236 = vpop.f32.mrb[0].mxu0
    %v237 = vpop.f32.mrb[0].mxu0
    %238 = vdwg.mxu0
    %vm239 = vcmask 31744
    %240 = vst.msk [vmem:[%s6] sm:$0xff] %vm239, %v234
    %242 = vrot.lane.b32.xlu0 %v234, 124
    %v243 = vpop.permute.xlu0 %242
    %vm245 = vcmask 7168
    %246 = vst.msk [vmem:[%s8] sm:$0xff] %vm245, %v243
    %v247 = vld [vmem:[%s5] sm:$0x1]
    %v248 = vmul.f32 %v247, 1.442695
    %v249 = vpow.pop %v248
    %v251 = vlaneseq
    %v252 = vshrl.u32 %v251, 7
    %v253 = vsub.s32 0, %v252
    %v254 = vrot.slane %v249, %v253
    %256 = vst.msk [vmem:[%s7] sm:$0xff] %vm239, %v254
    // Predicated region
    $region38: #{tpu_custom_call.1} parent=1 // pred_check
      _
    $region39: #{tpu_custom_call.1} parent=1 // pred_check_branch
      %258 = sbr.rel (0) target = $region41
    $region40: #{tpu_custom_call.1} parent=1 // pred_region
      _
    $region41: #{tpu_custom_call.1} parent=1 // pred_fallthru
      _
    // Predicated region
    $region42: #{tpu_custom_call.1} parent=1 // pred_check
      _
    $region43: #{tpu_custom_call.1} parent=1 // pred_check_branch
      %260 = sbr.rel (0) target = $region45
    $region44: #{tpu_custom_call.1} parent=1 // pred_region
      _
    $region45: #{tpu_custom_call.1} parent=1 // pred_fallthru
      _
    // Predicated region
    $region46: #{tpu_custom_call.1} parent=1 // pred_check
      _
    $region47: #{tpu_custom_call.1} parent=1 // pred_check_branch
      %262 = sbr.rel (0) target = $region49
    $region48: #{tpu_custom_call.1} parent=1 // pred_region
      _
    $region49: #{tpu_custom_call.1} parent=1 // pred_fallthru
      _
    // Predicated region
    $region50: #{tpu_custom_call.1} parent=1 // pred_check
      _
    $region51: #{tpu_custom_call.1} parent=1 // pred_check_branch
      %264 = sbr.rel (0) target = $region53
    $region52: #{tpu_custom_call.1} parent=1 // pred_region
      _
    $region53: #{tpu_custom_call.1} parent=1 // pred_fallthru
      _
    // Predicated region
    $region54: #{tpu_custom_call.1} parent=1 // pred_check
      _
    $region55: #{tpu_custom_call.1} parent=1 // pred_check_branch
      %266 = sbr.rel (0) target = $region57
    $region56: #{tpu_custom_call.1} parent=1 // pred_region
      _
    $region57: #{tpu_custom_call.1} parent=1 // pred_fallthru
      _
    // Predicated region
    $region58: #{tpu_custom_call.1} parent=1 // pred_check
      _
    $region59: #{tpu_custom_call.1} parent=1 // pred_check_branch
      %268 = sbr.rel (0) target = $region61
    $region60: #{tpu_custom_call.1} parent=1 // pred_region
      _
    $region61: #{tpu_custom_call.1} parent=1 // pred_fallthru
      _
    %269 = vsyncpa [#allocation3], 1
    %270 = vsyncpa [#allocation5], 1

</llo_original>
